<compile_context>
chip_gen: v7x
topology: tpu7x:2x2x1
jax: 0.10.0
libtpu: 0.0.40
codegen_flags: <defaults>
</compile_context>

<pallas_src>
import functools

import jax
import jax.numpy as jnp
from jax import lax
from jax.experimental import pallas as pl
from jax.experimental.pallas import tpu as pltpu


_MAX_TB = 512    # sublane tile cap (multiple of 8)
_MAX_TT = 1024   # lane tile cap (multiple of 128)


def _partial_logsum_kernel(x_ref, o_ref, *, B, T, tb, tT):
    """One grid cell: sum(log(x)) over in-bounds, non-last-row/col elements."""
    bi = pl.program_id(0)
    ti = pl.program_id(1)

    # Cast to f32 inside the kernel (works on v5e too; bf16 stays bf16 on HBM).
    x = x_ref[...].astype(jnp.float32)                      # (tb, tT)

    rows = bi * tb + lax.broadcasted_iota(jnp.int32, (tb, tT), 0)
    cols = ti * tT + lax.broadcasted_iota(jnp.int32, (tb, tT), 1)
    mask = (rows < B - 1) & (cols < T - 1)

    # Masked / padded entries -> 1.0, so log() contributes 0 and never NaNs.
    safe = jnp.where(mask, x, jnp.ones_like(x))
    part = jnp.sum(jnp.log(safe))

    # Each grid cell owns a distinct (8, 128) output block; broadcast the
    # scalar partial so the store is a full, unmasked lane-dense store.
    o_ref[...] = jnp.full(o_ref.shape, part, jnp.float32)


def loss_pallas(output: jax.Array) -> jax.Array:
    """Pallas equivalent of Loss.forward(output) for a (B, C, T) tensor."""
    B, C, T = output.shape
    del C
    # Channel-0-only view: (B, T), original dtype, B on sublanes, T on lanes.
    x2d = output[:, 0, :]

    tb = B if B <= _MAX_TB else _MAX_TB      # == B (full dim) or multiple of 8
    tT = T if T <= _MAX_TT else _MAX_TT      # == T (full dim) or multiple of 128
    nb = pl.cdiv(B, tb)
    nt = pl.cdiv(T, tT)

    kernel = functools.partial(_partial_logsum_kernel, B=B, T=T, tb=tb, tT=tT)
    partials = pl.pallas_call(
        kernel,
        out_shape=jax.ShapeDtypeStruct((nb, nt, 8, 128), jnp.float32),
        grid=(nb, nt),
        in_specs=[pl.BlockSpec((tb, tT), lambda bi, ti: (bi, ti))],
        out_specs=pl.BlockSpec((1, 1, 8, 128), lambda bi, ti: (bi, ti, 0, 0)),
        compiler_params=pltpu.CompilerParams(
            dimension_semantics=("parallel", "parallel")),
    )(x2d)

    # Every element of a block holds the same partial; take one per block and
    # finish the (tiny) reduction outside the kernel, then negate.
    return -jnp.sum(partials[:, :, 0, 0])


def loss_reference(output: jax.Array) -> jax.Array:
    """Pure-JAX reference matching the PyTorch double loop exactly."""
    out = output.astype(jnp.float32)
    sub = out[: out.shape[0] - 1, 0, : out.shape[2] - 1]
    return -jnp.sum(jnp.log(sub))


if __name__ == "__main__":
    # Small shapes consistent with the module: (batch, channels, seq).
    key = jax.random.PRNGKey(0)
    B, C, T = 8, 4, 16
    # Strictly positive values (the module takes log of probability-like data).
    output = jax.random.uniform(
        key, (B, C, T), dtype=jnp.float32, minval=0.05, maxval=1.0
    )

    loss_fn = jax.jit(loss_pallas)
    got = jax.block_until_ready(loss_fn(output))
    want = jax.block_until_ready(loss_reference(output))

    assert jnp.allclose(got, want, rtol=1e-5, atol=1e-5), (got, want)
    print("KERNEL_OK")
</pallas_src>

<mosaic_0001>
module attributes {stable_mosaic.version = 11 : i64} {
  func.func @_partial_logsum_kernel(%arg0: i32, %arg1: i32, %arg2: memref<8x16xf32, #tpu.memory_space<vmem>>, %arg3: memref<1x1x8x128xf32, #tpu.memory_space<vmem>>) attributes {dimension_semantics = [#tpu.dimension_semantics<parallel>, #tpu.dimension_semantics<parallel>], iteration_bounds = array<i64: 1, 1>, scalar_prefetch = 0 : i64, scratch_operands = 0 : i64, tpu.core_type = #tpu.core_type<tc>, window_params = [{transform_indices = @transform_0, window_bounds = array<i64: 8, 16>}, {transform_indices = @transform_1, window_bounds = array<i64: 1, 1, 8, 128>}]} {
    %c0 = arith.constant 0 : index
    %c0_0 = arith.constant 0 : index
    %0 = vector.load %arg2[%c0, %c0_0] : memref<8x16xf32, #tpu.memory_space<vmem>>, vector<8x16xf32>
    %c8_i32 = arith.constant 8 : i32
    %1 = arith.muli %arg0, %c8_i32 : i32
    %2 = tpu.iota {dimensions = array<i32: 0>} : vector<8x16xi32>
    %3 = vector.broadcast %1 : i32 to vector<8x16xi32>
    %4 = arith.addi %3, %2 : vector<8x16xi32>
    %c16_i32 = arith.constant 16 : i32
    %5 = arith.muli %arg1, %c16_i32 : i32
    %6 = tpu.iota {dimensions = array<i32: 1>} : vector<8x16xi32>
    %7 = vector.broadcast %5 : i32 to vector<8x16xi32>
    %8 = arith.addi %7, %6 : vector<8x16xi32>
    %c7_i32 = arith.constant 7 : i32
    %9 = vector.broadcast %c7_i32 : i32 to vector<8x16xi32>
    %10 = arith.cmpi slt, %4, %9 : vector<8x16xi32>
    %c15_i32 = arith.constant 15 : i32
    %11 = vector.broadcast %c15_i32 : i32 to vector<8x16xi32>
    %12 = arith.cmpi slt, %8, %11 : vector<8x16xi32>
    %13 = arith.andi %10, %12 : vector<8x16xi1>
    %cst = arith.constant 1.000000e+00 : f32
    %14 = vector.broadcast %cst : f32 to vector<8x16xf32>
    %15 = arith.select %13, %0, %14 : vector<8x16xi1>, vector<8x16xf32>
    %16 = math.log %15 : vector<8x16xf32>
    %17 = vector.shape_cast %16 : vector<8x16xf32> to vector<1x8x16xf32>
    %cst_1 = arith.constant dense<0.000000e+00> : vector<1xf32>
    %18 = vector.multi_reduction <add>, %17, %cst_1 [1, 2] : vector<1x8x16xf32> to vector<1xf32>
    %19 = vector.shape_cast %18 : vector<1xf32> to vector<1x1x1xf32>
    %20 = vector.extract %19[0, 0, 0] : f32 from vector<1x1x1xf32>
    %21 = vector.broadcast %20 : f32 to vector<1x1x8x128xf32>
    %c0_2 = arith.constant 0 : index
    %c0_3 = arith.constant 0 : index
    %c0_4 = arith.constant 0 : index
    %c0_5 = arith.constant 0 : index
    %22 = vector.load %arg3[%c0_2, %c0_3, %c0_4, %c0_5] : memref<1x1x8x128xf32, #tpu.memory_space<vmem>>, vector<1x1x8x128xf32>
    tpu.vector_store %arg3[%c0_2, %c0_3, %c0_4, %c0_5], %21 {strides = array<i32>} : memref<1x1x8x128xf32, #tpu.memory_space<vmem>>, vector<1x1x8x128xf32>,
    return
  }
  func.func @transform_0(%arg0: i32, %arg1: i32) -> (i32, i32) {
    %c0_i32 = arith.constant 0 : i32
    return %arg0, %arg1 : i32, i32
  }
  func.func @transform_1(%arg0: i32, %arg1: i32) -> (i32, i32, i32, i32) {
    %c0_i32 = arith.constant 0 : i32
    %c0_i32_0 = arith.constant 0 : i32
    %c0_i32_1 = arith.constant 0 : i32
    return %arg0, %arg1, %c0_i32, %c0_i32_0 : i32, i32, i32, i32
  }
}

</mosaic_0001>

<llo_original>
// kernel: loss_pallas.1
$region0: #{loss_pallas.1}
  #allocation0 [shape = 'u32[]', space=smem, size = 0x4, offset = 0x4, fixed_abs, tag = 'smem constant byte address 0x4 - core index']
  #allocation1 [shape = 'u32[144,128]{1,0:T(1,128)}', space=vmem, size = 0x12000, scoped, tag = 'internal scratch']
  %s0 = inlined_call_operand.vmem [shape: f32[8,16], index: 0, kind: input, shape index: {}]
  %s1 = inlined_call_operand.vmem [shape: f32[1,1,8,128], index: 1, kind: output, shape index: {}]
  %s2 = sld [smem:[#allocation0]]
  $region14: #{loss_pallas.1} parent=0
    _
  %s4 = ssub.s32 1, %s2
  %s5 = scalar_select 0, %s4, %s2
  // Predicated region
  $region2: #{loss_pallas.1} parent=0 // pred_check
    _
  $region3: #{loss_pallas.1} parent=0 // pred_check_branch
    %7 = sbr.rel (0) target = $region5
  $region4: #{loss_pallas.1} parent=0 // pred_region
    _
  $region5: #{loss_pallas.1} parent=0 // pred_fallthru
    _
  %v8 = vld [vmem:[%s0] sm:$0xff]
  %s9 = smul.u32 0, 8
  %v10 = vlaneseq
  %v11 = vshrl.u32 %v10, 7
  %v12 = vstv %s9
  %v13 = vadd.s32 %v12, %v11
  %s14 = smul.u32 0, 16
  %v15 = vlaneseq
  %v16 = vand.u32 %v15, 127
  %v17 = vstv %s14
  %v18 = vadd.s32 %v17, %v16
  %vm19 = vcmp.lt.s32.totalorder %v13, 7
  %vm20 = vcmp.lt.s32.totalorder %v18, 15
  %vm21 = vmand %vm19, %vm20
  %v22 = vsel %vm21, %v8, 1.0
  %v23 = vlog2.pop %v22
  %v24 = vmul.f32 %v23, 0.6931472
  %vm25 = vcmask 130048
  %v26 = vsel %vm25, %v24, 0.0
  %27 = vadd.xlane.f32.xlu0 %v26
  %v28 = vpop.xlane.xlu0 %27
  %v29 = vrot.slane %v28, 4
  %v30 = vadd.f32 %v28, %v29
  %v31 = vrot.slane %v30, 2
  %v32 = vadd.f32 %v30, %v31
  %v33 = vrot.slane %v32, 1
  %v34 = vadd.f32 %v32, %v33
  %s35 = vtos %v34
  %v36 = vstv %s35
  %37 = vst [vmem:[%s1] sm:$0xff] %v36
  // Predicated region
  $region6: #{loss_pallas.1} parent=0 // pred_check
    _
  $region7: #{loss_pallas.1} parent=0 // pred_check_branch
    %39 = sbr.rel (0) target = $region9
  $region8: #{loss_pallas.1} parent=0 // pred_region
    _
  $region9: #{loss_pallas.1} parent=0 // pred_fallthru
    _
  // Predicated region
  $region10: #{loss_pallas.1} parent=0 // pred_check
    _
  $region11: #{loss_pallas.1} parent=0 // pred_check_branch
    %41 = sbr.rel (0) target = $region13
  $region12: #{loss_pallas.1} parent=0 // pred_region
    _
  $region13: #{loss_pallas.1} parent=0 // pred_fallthru
    _

</llo_original>
